<compile_context>
chip_gen: v7x
topology: tpu7x:2x2x1
jax: 0.10.0
libtpu: 0.0.40
codegen_flags: <defaults>
</compile_context>

<pallas_src>
import functools

import jax
import jax.numpy as jnp
from jax.experimental import pallas as pl
from jax.experimental.pallas import tpu as pltpu


def _round_up(x, m):
    return (x + m - 1) // m * m


def cross_attention_kernel(src_ref, tgt_ref, mask_ref,
                           w1s_ref, w1t_ref, b1_ref, w2_ref,
                           out_ref, wts_ref, *, s_real, use_mxu_reduce):
    # src_ref : [1, tT, Ssub, Dsrc]   tgt_ref : [1, tT, Ssub, Dtgt]
    # mask_ref: [1, tT, Ssub]
    # w1s_ref : [Dsrc, Hp]            w1t_ref : [Dtgt, Hp]
    # b1_ref  : [1, Hp]               w2_ref  : [1, Hp]
    # out_ref : [1, tT, D_pad]        wts_ref : [1, tT, S_wpad]
    src = src_ref[0]                              # [tT, Ssub, Dsrc]
    tgt = tgt_ref[0]                              # [tT, Ssub, Dtgt]
    mask = mask_ref[0].astype(jnp.float32)        # [tT, Ssub]

    tT, Ssub, Dsrc = src.shape
    Dtgt = tgt.shape[-1]
    Hp = b1_ref.shape[-1]
    D_pad = out_ref.shape[-1]
    S_wpad = wts_ref.shape[-1]

    src2d = src.reshape(tT * Ssub, Dsrc)
    tgt2d = tgt.reshape(tT * Ssub, Dtgt)

    # attn_1: Linear(Dsrc+Dtgt -> H).  cat([src,tgt]) @ W1^T == src@W1s + tgt@W1t.
    # (Fusing into one K=Dsrc+Dtgt matmul would halve MXU pushes for tiny D but
    # needs an in-kernel lane concat; the kernel is HBM-bound so the two dense
    # dots are kept for layout simplicity.)
    h = jnp.dot(src2d, w1s_ref[...], preferred_element_type=jnp.float32)
    h = h + jnp.dot(tgt2d, w1t_ref[...], preferred_element_type=jnp.float32)
    h = jnp.tanh(h + b1_ref[...].astype(jnp.float32))            # [tT*Ssub, Hp]

    # attn_2: Linear(H -> 1, bias=False) as a VPU multiply + lane reduce over
    # the 128-padded H axis (no N=1 MXU matmul, no [*,1] -> [tT,S] relayout).
    w2_row = w2_ref[...].astype(jnp.float32).reshape(1, 1, Hp)   # [1, 1, Hp]
    scores = jnp.sum(h.reshape(tT, Ssub, Hp) * w2_row, axis=-1)  # [tT, Ssub]

    # multiplicative mask (matches the PyTorch module exactly: masked positions
    # get score 0, not -inf), softmax over S.
    scores = mask * scores
    if Ssub > s_real:
        # exclude wrapper-added S padding from the softmax entirely
        col = jax.lax.broadcasted_iota(jnp.int32, (tT, Ssub), 1)
        scores = jnp.where(col < s_real, scores, jnp.float32(-1e30))

    m = jnp.max(scores, axis=-1, keepdims=True)
    e = jnp.exp(scores - m)
    denom = jnp.sum(e, axis=-1, keepdims=True)                   # [tT, 1]
    w = e * pl.reciprocal(denom, approx=False)                   # [tT, Ssub]

    # attn_out = sum_S (weights * src_reps)
    if use_mxu_reduce:
        # very large S/D only: contraction over S on the MXU, batched over tT
        out = jax.lax.dot_general(
            w.astype(src.dtype), src,
            dimension_numbers=(((1,), (1,)), ((0,), (0,))),
            preferred_element_type=jnp.float32)                  # [tT, Dsrc]
    else:
        # VPU multiply + sublane-reduce; avoids degenerate M=1 MXU matvecs and
        # keeps the softmax weights in f32 for the reduction.
        out = jnp.sum(w[:, :, None] * src.astype(jnp.float32), axis=1)

    # lane-dense stores: last dims padded to multiples of 128 (sliced off in
    # the wrapper).  No-ops when the real dims are already 128-aligned.
    out = out.astype(out_ref.dtype)
    if D_pad > Dsrc:
        out = jnp.concatenate(
            [out, jnp.zeros((tT, D_pad - Dsrc), out_ref.dtype)], axis=-1)
    out_ref[0] = out

    w_st = w.astype(wts_ref.dtype)
    if S_wpad > Ssub:
        w_st = jnp.concatenate(
            [w_st, jnp.zeros((tT, S_wpad - Ssub), wts_ref.dtype)], axis=-1)
    wts_ref[0] = w_st


def _vmem_budget():
    """Generation-aware VMEM budgets: (vmem_limit_bytes, working-set budget)."""
    try:
        cap = int(pltpu.get_tpu_info().vmem_capacity_bytes)
    except Exception:
        cap = 64 * 1024 * 1024            # conservative default (v7x per-core VMEM)
    # ~25% headroom for Mosaic internal scratch / spills / semaphores.
    limit = max(16 << 20, min(int(cap * 0.75), cap - (8 << 20)))
    tile_budget = max(8 << 20, int(cap * 0.60))
    return limit, tile_budget


def _pick_t_tile(T8, bytes_per_row, budget_bytes, batch, min_grid_steps=4):
    """Largest multiple-of-8 T-tile whose double-buffered working set fits the
    budget, shrunk (when possible) so the grid keeps >= min_grid_steps steps
    for megacore sharding / v7x's two TensorCores and DMA/compute overlap."""
    max_rows = max(8, (budget_bytes // max(1, bytes_per_row)) // 8 * 8)
    tT = min(T8, max_rows)
    while tT > 8 and batch * pl.cdiv(T8, tT) < min_grid_steps:
        tT = max(8, (tT // 2) // 8 * 8)
    return tT


def cross_attention(src_reps, tgt_reps, mask, W1, b1, W2, *, compute_dtype=None):
    """src_reps [B,T,S,Dsrc], tgt_reps [B,T,S,Dtgt], mask [B,T,S].
    W1 [H, Dsrc+Dtgt], b1 [H], W2 [1, H]  (PyTorch Linear weight layout).

    compute_dtype=jnp.bfloat16 halves src/tgt HBM read traffic for this
    HBM-bandwidth-bound kernel (recommended at production call sites on
    v5e/v6e/v7x); matmul accumulation, softmax and both outputs stay float32.
    The default (None) keeps strict f32 numerics."""
    out_dtype = src_reps.dtype
    if compute_dtype is not None:
        src_reps = src_reps.astype(compute_dtype)
        tgt_reps = tgt_reps.astype(compute_dtype)
        W1 = W1.astype(compute_dtype)
        b1 = b1.astype(compute_dtype)
        W2 = W2.astype(compute_dtype)

    B, T, S, Dsrc = src_reps.shape
    Dtgt = tgt_reps.shape[-1]
    H = W1.shape[0]

    # ---- padded sizes -------------------------------------------------------
    S_sub = _round_up(S, 8)        # sublane-aligned S -> relayout-free reshape
    H_pad = _round_up(H, 128)      # lane-dense hidden: dense MXU N, dense vregs
    D_pad = _round_up(Dsrc, 128)   # lane-dense attn_out stores
    S_wpad = _round_up(S_sub, 128) # lane-dense attn_weights stores

    # ---- weights: split / transpose / zero-pad H (tiny, done once in XLA) ---
    w_dt = W1.dtype
    w1s = jnp.zeros((Dsrc, H_pad), w_dt).at[:, :H].set(jnp.transpose(W1[:, :Dsrc]))
    w1t = jnp.zeros((Dtgt, H_pad), w_dt).at[:, :H].set(jnp.transpose(W1[:, Dsrc:]))
    b1p = jnp.zeros((1, H_pad), w_dt).at[:, :H].set(b1.reshape(1, H))
    w2p = jnp.zeros((1, H_pad), w_dt).at[:, :H].set(W2.reshape(1, H))

    # ---- generation-aware T-tile sizing (physically (8,128)-padded dims) ----
    vmem_limit, tile_budget = _vmem_budget()
    in_item = jnp.dtype(src_reps.dtype).itemsize
    out_item = jnp.dtype(out_dtype).itemsize
    w_item = jnp.dtype(w_dt).itemsize
    d_src_lane = _round_up(Dsrc, 128)
    d_tgt_lane = _round_up(Dtgt, 128)
    s_lane = _round_up(S_sub, 128)

    bytes_per_row = (
        2 * S_sub * (d_src_lane + d_tgt_lane) * in_item        # src + tgt tiles (x2 bufs)
        + 2 * s_lane * jnp.dtype(mask.dtype).itemsize          # mask tile
        + 2 * (D_pad + S_wpad) * out_item                      # output tiles
        + 2 * S_sub * H_pad * 4)                               # f32 h / score temporaries
    # resident weights (conservatively counted double-buffered, 8-sublane padded)
    fixed_bytes = 2 * (_round_up(Dsrc, 8) + _round_up(Dtgt, 8) + 2 * 8) * H_pad * w_item

    T8 = _round_up(T, 8)
    tT = _pick_t_tile(T8, bytes_per_row,
                      max(8 * bytes_per_row, tile_budget - fixed_bytes), B)
    T_pad = _round_up(T8, tT)      # pad T instead of falling back to a full-T tile
    grid_t = T_pad // tT

    # ---- pad ragged axes once in the wrapper (no-op for aligned shapes) -----
    if T_pad != T or S_sub != S:
        pad4 = ((0, 0), (0, T_pad - T), (0, S_sub - S), (0, 0))
        src_reps = jnp.pad(src_reps, pad4)
        tgt_reps = jnp.pad(tgt_reps, pad4)
        mask = jnp.pad(mask, ((0, 0), (0, T_pad - T), (0, S_sub - S)))

    # Degenerate batched M=1 MXU matvecs waste the MXU; keep the VPU path
    # unless S and Dsrc are both genuinely large.
    use_mxu_reduce = (Dsrc >= 512 and S_sub >= 256)

    kernel = functools.partial(cross_attention_kernel,
                               s_real=S, use_mxu_reduce=use_mxu_reduce)

    out_shapes = (
        jax.ShapeDtypeStruct((B, T_pad, D_pad), out_dtype),    # attn_out (padded)
        jax.ShapeDtypeStruct((B, T_pad, S_wpad), out_dtype),   # attn_weights (padded)
    )

    grid_spec = pltpu.PrefetchScalarGridSpec(
        num_scalar_prefetch=0,
        grid=(B, grid_t),
        in_specs=[
            pl.BlockSpec((1, tT, S_sub, Dsrc), lambda b, t: (b, t, 0, 0)),
            pl.BlockSpec((1, tT, S_sub, Dtgt), lambda b, t: (b, t, 0, 0)),
            pl.BlockSpec((1, tT, S_sub), lambda b, t: (b, t, 0)),
            # weights: constant index_maps -> not re-DMA'd across grid steps
            pl.BlockSpec((Dsrc, H_pad), lambda b, t: (0, 0)),
            pl.BlockSpec((Dtgt, H_pad), lambda b, t: (0, 0)),
            pl.BlockSpec((1, H_pad), lambda b, t: (0, 0)),
            pl.BlockSpec((1, H_pad), lambda b, t: (0, 0)),
        ],
        out_specs=[
            pl.BlockSpec((1, tT, D_pad), lambda b, t: (b, t, 0)),
            pl.BlockSpec((1, tT, S_wpad), lambda b, t: (b, t, 0)),
        ],
    )

    attn_out_p, attn_w_p = pl.pallas_call(
        kernel,
        out_shape=out_shapes,
        grid_spec=grid_spec,
        compiler_params=pltpu.CompilerParams(
            dimension_semantics=("parallel", "parallel"),
            vmem_limit_bytes=vmem_limit),
    )(src_reps, tgt_reps, mask, w1s, w1t, b1p, w2p)

    # strip T / lane padding
    return attn_out_p[:, :T, :Dsrc], attn_w_p[:, :T, :S]


def cross_attention_ref(src_reps, tgt_reps, mask, W1, b1, W2):
    """Pure-JAX reference mirroring the PyTorch forward exactly."""
    cat = jnp.concatenate([src_reps, tgt_reps], axis=-1)
    h = jnp.tanh(jnp.einsum('btsd,hd->btsh', cat, W1) + b1)
    scores = jnp.einsum('btsh,oh->btso', h, W2)[..., 0]        # squeeze(3)
    scores = mask * scores
    weights = jax.nn.softmax(scores, axis=2)
    out = jnp.sum(weights[..., None] * src_reps, axis=2)
    return out, weights


if __name__ == "__main__":
    B, T, S = 2, 8, 8
    D_src, D_tgt, H = 16, 16, 32

    key = jax.random.PRNGKey(0)
    k_src, k_tgt, k_mask, k_w1, k_b1, k_w2 = jax.random.split(key, 6)

    src_reps = jax.random.normal(k_src, (B, T, S, D_src), dtype=jnp.float32)
    tgt_reps = jax.random.normal(k_tgt, (B, T, S, D_tgt), dtype=jnp.float32)
    mask = (jax.random.uniform(k_mask, (B, T, S)) > 0.3).astype(jnp.float32)

    # Deterministic parameter init (PyTorch Linear default: U(-1/sqrt(fan_in), +1/sqrt(fan_in)))
    fan1 = D_src + D_tgt
    W1 = jax.random.uniform(k_w1, (H, fan1), minval=-1.0 / fan1**0.5,
                            maxval=1.0 / fan1**0.5, dtype=jnp.float32)
    b1 = jax.random.uniform(k_b1, (H,), minval=-1.0 / fan1**0.5,
                            maxval=1.0 / fan1**0.5, dtype=jnp.float32)
    W2 = jax.random.uniform(k_w2, (1, H), minval=-1.0 / H**0.5,
                            maxval=1.0 / H**0.5, dtype=jnp.float32)

    ref_out, ref_weights = cross_attention_ref(src_reps, tgt_reps, mask, W1, b1, W2)

    # strict f32 path
    attn_out, attn_weights = cross_attention(src_reps, tgt_reps, mask, W1, b1, W2)
    jax.block_until_ready((attn_out, attn_weights))
    assert attn_out.shape == ref_out.shape and attn_weights.shape == ref_weights.shape
    assert jnp.allclose(attn_out, ref_out, rtol=1e-5, atol=1e-5), "attn_out mismatch"
    assert jnp.allclose(attn_weights, ref_weights, rtol=1e-5, atol=1e-5), "attn_weights mismatch"

    # bf16 compute path (recommended production setting on v5e/v6e/v7x; halves
    # HBM read traffic for this memory-bound kernel).  Looser tolerance.
    out_bf, w_bf = cross_attention(src_reps, tgt_reps, mask, W1, b1, W2,
                                   compute_dtype=jnp.bfloat16)
    jax.block_until_ready((out_bf, w_bf))
    assert jnp.allclose(out_bf, ref_out, rtol=5e-2, atol=5e-2), "bf16 attn_out mismatch"
    assert jnp.allclose(w_bf, ref_weights, rtol=5e-2, atol=5e-2), "bf16 attn_weights mismatch"

    print("KERNEL_OK")
</pallas_src>

<mosaic_0001>
module attributes {stable_mosaic.version = 11 : i64} {
  func.func @cross_attention_kernel(%arg0: i32, %arg1: i32, %arg2: memref<1x8x8x16xf32, #tpu.memory_space<vmem>>, %arg3: memref<1x8x8x16xf32, #tpu.memory_space<vmem>>, %arg4: memref<1x8x8xf32, #tpu.memory_space<vmem>>, %arg5: memref<16x128xf32, #tpu.memory_space<vmem>>, %arg6: memref<16x128xf32, #tpu.memory_space<vmem>>, %arg7: memref<1x128xf32, #tpu.memory_space<vmem>>, %arg8: memref<1x128xf32, #tpu.memory_space<vmem>>, %arg9: memref<1x8x128xf32, #tpu.memory_space<vmem>>, %arg10: memref<1x8x128xf32, #tpu.memory_space<vmem>>) attributes {dimension_semantics = [#tpu.dimension_semantics<parallel>, #tpu.dimension_semantics<parallel>], iteration_bounds = array<i64: 2, 1>, scalar_prefetch = 0 : i64, scratch_operands = 0 : i64, tpu.core_type = #tpu.core_type<tc>, window_params = [{transform_indices = @transform_0, window_bounds = array<i64: 1, 8, 8, 16>}, {transform_indices = @transform_1, window_bounds = array<i64: 1, 8, 8, 16>}, {transform_indices = @transform_2, window_bounds = array<i64: 1, 8, 8>}, {pipeline_mode = #tpu.pipeline_mode<synchronous>, transform_indices = @transform_3, window_bounds = array<i64: 16, 128>}, {pipeline_mode = #tpu.pipeline_mode<synchronous>, transform_indices = @transform_4, window_bounds = array<i64: 16, 128>}, {pipeline_mode = #tpu.pipeline_mode<synchronous>, transform_indices = @transform_5, window_bounds = array<i64: 1, 128>}, {pipeline_mode = #tpu.pipeline_mode<synchronous>, transform_indices = @transform_6, window_bounds = array<i64: 1, 128>}, {transform_indices = @transform_7, window_bounds = array<i64: 1, 8, 128>}, {transform_indices = @transform_8, window_bounds = array<i64: 1, 8, 128>}]} {
    %c0 = arith.constant 0 : index
    %c0_0 = arith.constant 0 : index
    %c0_1 = arith.constant 0 : index
    %c0_2 = arith.constant 0 : index
    %0 = vector.load %arg2[%c0, %c0_0, %c0_1, %c0_2] : memref<1x8x8x16xf32, #tpu.memory_space<vmem>>, vector<1x8x8x16xf32>
    %1 = vector.shape_cast %0 : vector<1x8x8x16xf32> to vector<8x8x16xf32>
    %c0_3 = arith.constant 0 : index
    %c0_4 = arith.constant 0 : index
    %c0_5 = arith.constant 0 : index
    %c0_6 = arith.constant 0 : index
    %2 = vector.load %arg3[%c0_3, %c0_4, %c0_5, %c0_6] : memref<1x8x8x16xf32, #tpu.memory_space<vmem>>, vector<1x8x8x16xf32>
    %3 = vector.shape_cast %2 : vector<1x8x8x16xf32> to vector<8x8x16xf32>
    %c0_7 = arith.constant 0 : index
    %c0_8 = arith.constant 0 : index
    %c0_9 = arith.constant 0 : index
    %4 = vector.load %arg4[%c0_7, %c0_8, %c0_9] : memref<1x8x8xf32, #tpu.memory_space<vmem>>, vector<1x8x8xf32>
    %5 = vector.shape_cast %4 : vector<1x8x8xf32> to vector<8x8xf32>
    %6 = vector.shape_cast %1 : vector<8x8x16xf32> to vector<64x16xf32>
    %7 = vector.shape_cast %3 : vector<8x8x16xf32> to vector<64x16xf32>
    %c0_10 = arith.constant 0 : index
    %c0_11 = arith.constant 0 : index
    %8 = vector.load %arg5[%c0_10, %c0_11] : memref<16x128xf32, #tpu.memory_space<vmem>>, vector<16x128xf32>
    %cst = arith.constant dense<0.000000e+00> : vector<64x128xf32>
    %9 = tpu.matmul %6, %8, %cst {dimension_numbers = #tpu.dot_dimension_numbers<[1], [0], [0], [1], [0, 0, 1, 1], [], []>} : vector<64x16xf32>, vector<16x128xf32>, vector<64x128xf32> -> vector<64x128xf32>
    %c0_12 = arith.constant 0 : index
    %c0_13 = arith.constant 0 : index
    %10 = vector.load %arg6[%c0_12, %c0_13] : memref<16x128xf32, #tpu.memory_space<vmem>>, vector<16x128xf32>
    %cst_14 = arith.constant dense<0.000000e+00> : vector<64x128xf32>
    %11 = tpu.matmul %7, %10, %cst_14 {dimension_numbers = #tpu.dot_dimension_numbers<[1], [0], [0], [1], [0, 0, 1, 1], [], []>} : vector<64x16xf32>, vector<16x128xf32>, vector<64x128xf32> -> vector<64x128xf32>
    %12 = arith.addf %9, %11 : vector<64x128xf32>
    %c0_15 = arith.constant 0 : index
    %c0_16 = arith.constant 0 : index
    %13 = vector.load %arg7[%c0_15, %c0_16] : memref<1x128xf32, #tpu.memory_space<vmem>>, vector<1x128xf32>
    %14 = vector.broadcast %13 : vector<1x128xf32> to vector<64x128xf32>
    %15 = arith.addf %12, %14 : vector<64x128xf32>
    %16 = math.tanh %15 : vector<64x128xf32>
    %c0_17 = arith.constant 0 : index
    %c0_18 = arith.constant 0 : index
    %17 = vector.load %arg8[%c0_17, %c0_18] : memref<1x128xf32, #tpu.memory_space<vmem>>, vector<1x128xf32>
    %18 = vector.shape_cast %17 : vector<1x128xf32> to vector<1x1x128xf32>
    %19 = vector.shape_cast %16 : vector<64x128xf32> to vector<8x8x128xf32>
    %20 = vector.broadcast %18 : vector<1x1x128xf32> to vector<8x8x128xf32>
    %21 = arith.mulf %19, %20 : vector<8x8x128xf32>
    %cst_19 = arith.constant dense<0.000000e+00> : vector<8x8xf32>
    %22 = vector.multi_reduction <add>, %21, %cst_19 [2] : vector<8x8x128xf32> to vector<8x8xf32>
    %23 = arith.mulf %5, %22 : vector<8x8xf32>
    %cst_20 = arith.constant dense<0xFF800000> : vector<8xf32>
    %24 = vector.multi_reduction <maximumf>, %23, %cst_20 [1] : vector<8x8xf32> to vector<8xf32>
    %25 = vector.shape_cast %24 : vector<8xf32> to vector<8x1xf32>
    %26 = vector.broadcast %25 : vector<8x1xf32> to vector<8x8xf32>
    %27 = arith.subf %23, %26 : vector<8x8xf32>
    %28 = math.exp %27 : vector<8x8xf32>
    %cst_21 = arith.constant dense<0.000000e+00> : vector<8xf32>
    %29 = vector.multi_reduction <add>, %28, %cst_21 [1] : vector<8x8xf32> to vector<8xf32>
    %30 = vector.shape_cast %29 : vector<8xf32> to vector<8x1xf32>
    %31 = tpu.reciprocal %30 : vector<8x1xf32> -> vector<8x1xf32>
    %32 = vector.broadcast %31 : vector<8x1xf32> to vector<8x8xf32>
    %33 = arith.mulf %28, %32 : vector<8x8xf32>
    %34 = vector.shape_cast %33 : vector<8x8xf32> to vector<8x8x1xf32>
    %35 = vector.broadcast %34 : vector<8x8x1xf32> to vector<8x8x16xf32>
    %36 = arith.mulf %35, %1 : vector<8x8x16xf32>
    %cst_22 = arith.constant dense<0.000000e+00> : vector<8x16xf32>
    %37 = vector.multi_reduction <add>, %36, %cst_22 [1] : vector<8x8x16xf32> to vector<8x16xf32>
    %cst_23 = arith.constant 0.000000e+00 : f32
    %38 = vector.broadcast %cst_23 : f32 to vector<8x112xf32>
    %39 = tpu.concatenate %37, %38 in 1 : vector<8x16xf32>, vector<8x112xf32> -> vector<8x128xf32>
    %c0_24 = arith.constant 0 : index
    %c0_25 = arith.constant 0 : index
    %c0_26 = arith.constant 0 : index
    %40 = vector.load %arg9[%c0_24, %c0_25, %c0_26] : memref<1x8x128xf32, #tpu.memory_space<vmem>>, vector<1x8x128xf32>
    %41 = vector.shape_cast %40 : vector<1x8x128xf32> to vector<8x128xf32>
    %42 = vector.shape_cast %39 : vector<8x128xf32> to vector<1x8x128xf32>
    tpu.vector_store %arg9[%c0_24, %c0_25, %c0_26], %42 {strides = array<i32>} : memref<1x8x128xf32, #tpu.memory_space<vmem>>, vector<1x8x128xf32>,
    %cst_27 = arith.constant 0.000000e+00 : f32
    %43 = vector.broadcast %cst_27 : f32 to vector<8x120xf32>
    %44 = tpu.concatenate %33, %43 in 1 : vector<8x8xf32>, vector<8x120xf32> -> vector<8x128xf32>
    %c0_28 = arith.constant 0 : index
    %c0_29 = arith.constant 0 : index
    %c0_30 = arith.constant 0 : index
    %45 = vector.load %arg10[%c0_28, %c0_29, %c0_30] : memref<1x8x128xf32, #tpu.memory_space<vmem>>, vector<1x8x128xf32>
    %46 = vector.shape_cast %45 : vector<1x8x128xf32> to vector<8x128xf32>
    %47 = vector.shape_cast %44 : vector<8x128xf32> to vector<1x8x128xf32>
    tpu.vector_store %arg10[%c0_28, %c0_29, %c0_30], %47 {strides = array<i32>} : memref<1x8x128xf32, #tpu.memory_space<vmem>>, vector<1x8x128xf32>,
    return
  }
  func.func @transform_0(%arg0: i32, %arg1: i32) -> (i32, i32, i32, i32) {
    %c0_i32 = arith.constant 0 : i32
    %c0_i32_0 = arith.constant 0 : i32
    %c0_i32_1 = arith.constant 0 : i32
    return %arg0, %arg1, %c0_i32, %c0_i32_0 : i32, i32, i32, i32
  }
  func.func @transform_1(%arg0: i32, %arg1: i32) -> (i32, i32, i32, i32) {
    %c0_i32 = arith.constant 0 : i32
    %c0_i32_0 = arith.constant 0 : i32
    %c0_i32_1 = arith.constant 0 : i32
    return %arg0, %arg1, %c0_i32, %c0_i32_0 : i32, i32, i32, i32
  }
  func.func @transform_2(%arg0: i32, %arg1: i32) -> (i32, i32, i32) {
    %c0_i32 = arith.constant 0 : i32
    %c0_i32_0 = arith.constant 0 : i32
    return %arg0, %arg1, %c0_i32 : i32, i32, i32
  }
  func.func @transform_3(%arg0: i32, %arg1: i32) -> (i32, i32) {
    %c0_i32 = arith.constant 0 : i32
    %c0_i32_0 = arith.constant 0 : i32
    %c0_i32_1 = arith.constant 0 : i32
    return %c0_i32, %c0_i32_0 : i32, i32
  }
  func.func @transform_4(%arg0: i32, %arg1: i32) -> (i32, i32) {
    %c0_i32 = arith.constant 0 : i32
    %c0_i32_0 = arith.constant 0 : i32
    %c0_i32_1 = arith.constant 0 : i32
    return %c0_i32, %c0_i32_0 : i32, i32
  }
  func.func @transform_5(%arg0: i32, %arg1: i32) -> (i32, i32) {
    %c0_i32 = arith.constant 0 : i32
    %c0_i32_0 = arith.constant 0 : i32
    %c0_i32_1 = arith.constant 0 : i32
    return %c0_i32, %c0_i32_0 : i32, i32
  }
  func.func @transform_6(%arg0: i32, %arg1: i32) -> (i32, i32) {
    %c0_i32 = arith.constant 0 : i32
    %c0_i32_0 = arith.constant 0 : i32
    %c0_i32_1 = arith.constant 0 : i32
    return %c0_i32, %c0_i32_0 : i32, i32
  }
  func.func @transform_7(%arg0: i32, %arg1: i32) -> (i32, i32, i32) {
    %c0_i32 = arith.constant 0 : i32
    %c0_i32_0 = arith.constant 0 : i32
    return %arg0, %arg1, %c0_i32 : i32, i32, i32
  }
  func.func @transform_8(%arg0: i32, %arg1: i32) -> (i32, i32, i32) {
    %c0_i32 = arith.constant 0 : i32
    %c0_i32_0 = arith.constant 0 : i32
    return %arg0, %arg1, %c0_i32 : i32, i32, i32
  }
}

</mosaic_0001>

<llo_original>
// kernel: tpu_custom_call.1
$region0: #{tpu_custom_call.1}
  #allocation0 [shape = 'u32[]', space=smem, size = 0x4, offset = 0x4, fixed_abs, tag = 'smem constant byte address 0x4 - core index']
  #allocation1 [shape = 'u32[144,128]{1,0:T(1,128)}', space=vmem, size = 0x12000, scoped, tag = 'internal scratch']
  %s0 = inlined_call_operand.hbm [shape: f32[2,8,8,16], index: 0, kind: input, shape index: {}]
  %s1 = inlined_call_operand.hbm [shape: f32[2,8,8,16], index: 1, kind: input, shape index: {}]
  %s2 = inlined_call_operand.hbm [shape: f32[2,8,8], index: 2, kind: input, shape index: {}]
  %s3 = inlined_call_operand.hbm [shape: f32[16,128], index: 3, kind: input, shape index: {}]
  %s4 = inlined_call_operand.hbm [shape: f32[16,128], index: 4, kind: input, shape index: {}]
  %s5 = inlined_call_operand.vmem [shape: f32[1,128], index: 5, kind: input, shape index: {}]
  %s6 = inlined_call_operand.vmem [shape: f32[1,128], index: 6, kind: input, shape index: {}]
  %s7 = inlined_call_operand.hbm [shape: f32[2,8,128], index: 7, kind: output, shape index: {0}]
  %s8 = inlined_call_operand.hbm [shape: f32[2,8,128], index: 8, kind: output, shape index: {1}]
  %9 = xla_tuple %s7, %s8
  %s10 = sld [smem:[#allocation0]]
  $region89: #{tpu_custom_call.1} parent=0
    _
  %s12 = ssub.s32 1, %s10
  %s13 = scalar_select 0, %s12, %s10
  $region1: #{tpu_custom_call.1} parent=0
    #allocation2 [shape = 'u8[65536]{0}', space=vmem, size = 0x10000, scoped, tag = 'input window, operand 0']
    #allocation3 [shape = 's32[2]{0}', space=sflag, size = 0x8, scoped, tag = 'scoped memory for tpu_custom_call.1']
    #allocation4 [shape = 's32[2]{0}', space=sflag, size = 0x8, scoped, tag = 'scoped memory for tpu_custom_call.1']
    #allocation5 [shape = 'u8[65536]{0}', space=vmem, size = 0x10000, scoped, tag = 'input window, operand 1']
    #allocation6 [shape = 's32[2]{0}', space=sflag, size = 0x8, scoped, tag = 'scoped memory for tpu_custom_call.1']
    #allocation7 [shape = 'u8[8192]{0}', space=vmem, size = 0x2000, scoped, tag = 'input window, operand 2']
    #allocation8 [shape = 'u8[8192]{0}', space=vmem, size = 0x2000, scoped, tag = 'input window, operand 3, single buffered']
    #allocation9 [shape = 's32[1]{0}', space=sflag, size = 0x4, scoped, tag = 'scoped memory for tpu_custom_call.1']
    #allocation10 [shape = 'u8[8192]{0}', space=vmem, size = 0x2000, scoped, tag = 'input window, operand 4, single buffered']
    #allocation11 [shape = 'u8[8192]{0}', space=vmem, size = 0x2000, scoped, tag = 'output window, operand 0']
    #allocation12 [shape = 'u8[8192]{0}', space=vmem, size = 0x2000, scoped, tag = 'output window, operand 1']
    #allocation13 [shape = 's32[2]{0}', space=sflag, size = 0x8, scoped, tag = 'scoped memory for tpu_custom_call.1']
    %14 = vsyncpa [#allocation3], 0
    %s15 = scalar_lea.sflag [#allocation3], 1
    %16 = vsyncpa %s15, 0
    %17 = vsyncpa [#allocation6], 0
    %s18 = scalar_lea.sflag [#allocation6], 1
    %19 = vsyncpa %s18, 0
    %20 = vsyncpa [#allocation9], 0
    %21 = vsyncpa [#allocation4], 0
    %s22 = scalar_lea.sflag [#allocation4], 1
    %23 = vsyncpa %s22, 0
    %24 = vsyncpa [#allocation13], 0
    %s25 = scalar_lea.sflag [#allocation13], 1
    %26 = vsyncpa %s25, 0
    loop: start=0, step=1, limit=4
    $region2: #{tpu_custom_call.1} parent=1 // loop_pre_header
      _
    $region3: #{tpu_custom_call.1} parent=1 // loop_header
      %s28 = sphi 0, %s32
      %p29 = scmp.ge.s32.totalorder %s28, 4
      %s35 = sphi 0, %s47
      %s36 = sphi 0, %s43
      %s37 = sphi 0, %s35
      %s38 = sphi 0, %s36
      %s39 = sphi 0, %s37
      %s40 = sphi 0, %s38
      %s52 = sphi 0, %s54
      %s55 = sphi 0, %s52
      %s56 = sphi 0, %s55
      %s72 = sphi 0, %s56
      %s80 = sphi 0, %s82
      %s83 = sphi 0, %s80
      %s84 = sphi 0, %s83
      %s100 = sphi 0, %s84
      %s108 = sphi 0, %s110
      %s111 = sphi 0, %s108
      %s112 = sphi 0, %s111
      %s128 = sphi 0, %s112
      %s132 = sphi 0, %s132
      %s134 = sphi 0, %s132
      %s135 = sphi 0, %s134
      %s149 = sphi 0, %s135
      %s153 = sphi 0, %s153
      %s155 = sphi 0, %s153
      %s156 = sphi 0, %s155
      %s170 = sphi 0, %s156
      %s174 = sphi 0, %s174
      %s176 = sphi 0, %s174
      %s177 = sphi 0, %s176
      %s191 = sphi 0, %s177
      %s195 = sphi 0, %s195
      %s197 = sphi 0, %s195
      %s198 = sphi 0, %s197
      %s212 = sphi 0, %s198
      %s220 = sphi 0, %s222
      %s223 = sphi 0, %s220
      %s224 = sphi 0, %s223
      %s240 = sphi 0, %s224
      %s248 = sphi 0, %s250
      %s251 = sphi 0, %s248
      %s252 = sphi 0, %s251
      %s268 = sphi 0, %s252
    $region4: #{tpu_custom_call.1} parent=1 // loop_header_branch
      %31 = sbr.rel (%p29) target = $region8
    $region5: #{tpu_custom_call.1} parent=1 // loop_body
      %s33 = ssub.s32 %s28, 1
      %s34 = ssub.s32 %s28, 2
      %s41 = sadd.s32 1, %s36
      %p42 = scmp.ge.s32.totalorder %s41, 1
      %s43 = scalar_select %p42, 0, %s41
      %s44 = sadd.s32 1, %s35
      %s45 = scalar_select %p42, %s44, %s35
      %p46 = scmp.ge.s32.totalorder %s45, 2
      %s47 = scalar_select %p46, 0, %s45
      %s48 = ssub.s32 %s35, %s47
      %s49 = ssub.s32 %s36, %s43
      %s50 = sor.u32 %s48, %s49
      %p51 = scmp.eq.s32.totalorder %s50, 0
      %s53 = sadd.s32 %s52, 1
      %s54 = scalar_select %p51, %s52, %s53
      %p57 = pneg %p51
      %p58 = scmp.eq.s32.totalorder %s28, 1
      %p59 = por %p57, %p58
      %p60 = scmp.ne.s32.totalorder %s52, %s55
      %p61 = scmp.eq.s32.totalorder %s28, 0
      %p62 = por %p60, %p61
      %p63 = scmp.ne.s32.totalorder %s52, %s55
      %p64 = scmp.eq.s32.totalorder %s33, 1
      %p65 = por %p63, %p64
      %p66 = scmp.ne.s32.totalorder %s55, %s56
      %p67 = scmp.eq.s32.totalorder %s33, 0
      %p68 = por %p66, %p67
      %p69 = scmp.ne.s32.totalorder %s55, %s56
      %p70 = scmp.eq.s32.totalorder %s34, 1
      %p71 = por %p69, %p70
      %p73 = scmp.ne.s32.totalorder %s56, %s72
      %p74 = scmp.eq.s32.totalorder %s34, 0
      %p75 = por %p73, %p74
      %s76 = ssub.s32 %s35, %s47
      %s77 = ssub.s32 %s36, %s43
      %s78 = sor.u32 %s76, %s77
      %p79 = scmp.eq.s32.totalorder %s78, 0
      %s81 = sadd.s32 %s80, 1
      %s82 = scalar_select %p79, %s80, %s81
      %p85 = pneg %p79
      %p86 = scmp.eq.s32.totalorder %s28, 1
      %p87 = por %p85, %p86
      %p88 = scmp.ne.s32.totalorder %s80, %s83
      %p89 = scmp.eq.s32.totalorder %s28, 0
      %p90 = por %p88, %p89
      %p91 = scmp.ne.s32.totalorder %s80, %s83
      %p92 = scmp.eq.s32.totalorder %s33, 1
      %p93 = por %p91, %p92
      %p94 = scmp.ne.s32.totalorder %s83, %s84
      %p95 = scmp.eq.s32.totalorder %s33, 0
      %p96 = por %p94, %p95
      %p97 = scmp.ne.s32.totalorder %s83, %s84
      %p98 = scmp.eq.s32.totalorder %s34, 1
      %p99 = por %p97, %p98
      %p101 = scmp.ne.s32.totalorder %s84, %s100
      %p102 = scmp.eq.s32.totalorder %s34, 0
      %p103 = por %p101, %p102
      %s104 = ssub.s32 %s35, %s47
      %s105 = ssub.s32 %s36, %s43
      %s106 = sor.u32 %s104, %s105
      %p107 = scmp.eq.s32.totalorder %s106, 0
      %s109 = sadd.s32 %s108, 1
      %s110 = scalar_select %p107, %s108, %s109
      %p113 = pneg %p107
      %p114 = scmp.eq.s32.totalorder %s28, 1
      %p115 = por %p113, %p114
      %p116 = scmp.ne.s32.totalorder %s108, %s111
      %p117 = scmp.eq.s32.totalorder %s28, 0
      %p118 = por %p116, %p117
      %p119 = scmp.ne.s32.totalorder %s108, %s111
      %p120 = scmp.eq.s32.totalorder %s33, 1
      %p121 = por %p119, %p120
      %p122 = scmp.ne.s32.totalorder %s111, %s112
      %p123 = scmp.eq.s32.totalorder %s33, 0
      %p124 = por %p122, %p123
      %p125 = scmp.ne.s32.totalorder %s111, %s112
      %p126 = scmp.eq.s32.totalorder %s34, 1
      %p127 = por %p125, %p126
      %p129 = scmp.ne.s32.totalorder %s112, %s128
      %p130 = scmp.eq.s32.totalorder %s34, 0
      %p131 = por %p129, %p130
      %s133 = sadd.s32 %s132, 1
      %p136 = scmp.eq.s32.totalorder %s28, 1
      %p137 = scmp.ne.s32.totalorder %s132, %s134
      %p138 = scmp.eq.s32.totalorder %s28, 0
      %p139 = por %p137, %p138
      %p140 = scmp.ne.s32.totalorder %s132, %s134
      %p141 = scmp.eq.s32.totalorder %s33, 1
      %p142 = por %p140, %p141
      %p143 = scmp.ne.s32.totalorder %s134, %s135
      %p144 = scmp.eq.s32.totalorder %s33, 0
      %p145 = por %p143, %p144
      %p146 = scmp.ne.s32.totalorder %s134, %s135
      %p147 = scmp.eq.s32.totalorder %s34, 1
      %p148 = por %p146, %p147
      %p150 = scmp.ne.s32.totalorder %s135, %s149
      %p151 = scmp.eq.s32.totalorder %s34, 0
      %p152 = por %p150, %p151
      %s154 = sadd.s32 %s153, 1
      %p157 = scmp.eq.s32.totalorder %s28, 1
      %p158 = scmp.ne.s32.totalorder %s153, %s155
      %p159 = scmp.eq.s32.totalorder %s28, 0
      %p160 = por %p158, %p159
      %p161 = scmp.ne.s32.totalorder %s153, %s155
      %p162 = scmp.eq.s32.totalorder %s33, 1
      %p163 = por %p161, %p162
      %p164 = scmp.ne.s32.totalorder %s155, %s156
      %p165 = scmp.eq.s32.totalorder %s33, 0
      %p166 = por %p164, %p165
      %p167 = scmp.ne.s32.totalorder %s155, %s156
      %p168 = scmp.eq.s32.totalorder %s34, 1
      %p169 = por %p167, %p168
      %p171 = scmp.ne.s32.totalorder %s156, %s170
      %p172 = scmp.eq.s32.totalorder %s34, 0
      %p173 = por %p171, %p172
      %s175 = sadd.s32 %s174, 1
      %p178 = scmp.eq.s32.totalorder %s28, 1
      %p179 = scmp.ne.s32.totalorder %s174, %s176
      %p180 = scmp.eq.s32.totalorder %s28, 0
      %p181 = por %p179, %p180
      %p182 = scmp.ne.s32.totalorder %s174, %s176
      %p183 = scmp.eq.s32.totalorder %s33, 1
      %p184 = por %p182, %p183
      %p185 = scmp.ne.s32.totalorder %s176, %s177
      %p186 = scmp.eq.s32.totalorder %s33, 0
      %p187 = por %p185, %p186
      %p188 = scmp.ne.s32.totalorder %s176, %s177
      %p189 = scmp.eq.s32.totalorder %s34, 1
      %p190 = por %p188, %p189
      %p192 = scmp.ne.s32.totalorder %s177, %s191
      %p193 = scmp.eq.s32.totalorder %s34, 0
      %p194 = por %p192, %p193
      %s196 = sadd.s32 %s195, 1
      %p199 = scmp.eq.s32.totalorder %s28, 1
      %p200 = scmp.ne.s32.totalorder %s195, %s197
      %p201 = scmp.eq.s32.totalorder %s28, 0
      %p202 = por %p200, %p201
      %p203 = scmp.ne.s32.totalorder %s195, %s197
      %p204 = scmp.eq.s32.totalorder %s33, 1
      %p205 = por %p203, %p204
      %p206 = scmp.ne.s32.totalorder %s197, %s198
      %p207 = scmp.eq.s32.totalorder %s33, 0
      %p208 = por %p206, %p207
      %p209 = scmp.ne.s32.totalorder %s197, %s198
      %p210 = scmp.eq.s32.totalorder %s34, 1
      %p211 = por %p209, %p210
      %p213 = scmp.ne.s32.totalorder %s198, %s212
      %p214 = scmp.eq.s32.totalorder %s34, 0
      %p215 = por %p213, %p214
      %s216 = ssub.s32 %s35, %s47
      %s217 = ssub.s32 %s36, %s43
      %s218 = sor.u32 %s216, %s217
      %p219 = scmp.eq.s32.totalorder %s218, 0
      %s221 = sadd.s32 %s220, 1
      %s222 = scalar_select %p219, %s220, %s221
      %p225 = pneg %p219
      %p226 = scmp.eq.s32.totalorder %s28, 1
      %p227 = por %p225, %p226
      %p228 = scmp.ne.s32.totalorder %s220, %s223
      %p229 = scmp.eq.s32.totalorder %s28, 0
      %p230 = por %p228, %p229
      %p231 = scmp.ne.s32.totalorder %s220, %s223
      %p232 = scmp.eq.s32.totalorder %s33, 1
      %p233 = por %p231, %p232
      %p234 = scmp.ne.s32.totalorder %s223, %s224
      %p235 = scmp.eq.s32.totalorder %s33, 0
      %p236 = por %p234, %p235
      %p237 = scmp.ne.s32.totalorder %s223, %s224
      %p238 = scmp.eq.s32.totalorder %s34, 1
      %p239 = por %p237, %p238
      %p241 = scmp.ne.s32.totalorder %s224, %s240
      %p242 = scmp.eq.s32.totalorder %s34, 0
      %p243 = por %p241, %p242
      %s244 = ssub.s32 %s35, %s47
      %s245 = ssub.s32 %s36, %s43
      %s246 = sor.u32 %s244, %s245
      %p247 = scmp.eq.s32.totalorder %s246, 0
      %s249 = sadd.s32 %s248, 1
      %s250 = scalar_select %p247, %s248, %s249
      %p253 = pneg %p247
      %p254 = scmp.eq.s32.totalorder %s28, 1
      %p255 = por %p253, %p254
      %p256 = scmp.ne.s32.totalorder %s248, %s251
      %p257 = scmp.eq.s32.totalorder %s28, 0
      %p258 = por %p256, %p257
      %p259 = scmp.ne.s32.totalorder %s248, %s251
      %p260 = scmp.eq.s32.totalorder %s33, 1
      %p261 = por %p259, %p260
      %p262 = scmp.ne.s32.totalorder %s251, %s252
      %p263 = scmp.eq.s32.totalorder %s33, 0
      %p264 = por %p262, %p263
      %p265 = scmp.ne.s32.totalorder %s251, %s252
      %p266 = scmp.eq.s32.totalorder %s34, 1
      %p267 = por %p265, %p266
      %p269 = scmp.ne.s32.totalorder %s252, %s268
      %p270 = scmp.eq.s32.totalorder %s34, 0
      %p271 = por %p269, %p270
      %p272 = scmp.le.s32.totalorder 1, %s28
      %p273 = scmp.lt.s32.totalorder %s28, 3
      %p274 = pnand %p272, %p273
      %p275 = pneg %p274
      // Predicated region
      $region9: #{tpu_custom_call.1} parent=5 // pred_check
        _
      $region10: #{tpu_custom_call.1} parent=5 // pred_check_branch
        %277 = sbr.rel (%p274) target = $region12
      $region11: #{tpu_custom_call.1} parent=5 // pred_region
        %s278 = ssub.s32 %s28, 1
        // Predicated region
        $region13: #{tpu_custom_call.1} parent=11 // pred_check
          %p279 = pneg %p145
        $region14: #{tpu_custom_call.1} parent=11 // pred_check_branch
          %281 = sbr.rel (%p279) target = $region16
        $region15: #{tpu_custom_call.1} parent=11 // pred_region
          %s283 = ssub.s32 256, 256
          %284 = vsyncadd [#allocation9], %s283
          %s285 = sshll.u32 [#allocation8], 4
          %s286 = int_to_ptr.vmem [resolvable:$true] %s285
          %291 = dma.hbm_to_vmem [thread:$0]  %s3, 256, %s286, [#allocation9], 128, 128, 8
        $region16: #{tpu_custom_call.1} parent=11 // pred_fallthru
          _
        // Predicated region
        $region17: #{tpu_custom_call.1} parent=11 // pred_check
          %p292 = pneg %p166
        $region18: #{tpu_custom_call.1} parent=11 // pred_check_branch
          %294 = sbr.rel (%p292) target = $region20
        $region19: #{tpu_custom_call.1} parent=11 // pred_region
          %s296 = ssub.s32 256, 256
          %297 = vsyncadd [#allocation9], %s296
          %s298 = sshll.u32 [#allocation10], 4
          %s299 = int_to_ptr.vmem [resolvable:$true] %s298
          %304 = dma.hbm_to_vmem [thread:$0]  %s4, 256, %s299, [#allocation9], 128, 128, 8
        $region20: #{tpu_custom_call.1} parent=11 // pred_fallthru
          _
        // Predicated region
        $region21: #{tpu_custom_call.1} parent=11 // pred_check
          %p305 = pneg %p187
        $region22: #{tpu_custom_call.1} parent=11 // pred_check_branch
          %307 = sbr.rel (%p305) target = $region24
        $region23: #{tpu_custom_call.1} parent=11 // pred_region
          _
        $region24: #{tpu_custom_call.1} parent=11 // pred_fallthru
          _
        // Predicated region
        $region25: #{tpu_custom_call.1} parent=11 // pred_check
          %p308 = pneg %p208
        $region26: #{tpu_custom_call.1} parent=11 // pred_check_branch
          %310 = sbr.rel (%p308) target = $region28
        $region27: #{tpu_custom_call.1} parent=11 // pred_region
          _
        $region28: #{tpu_custom_call.1} parent=11 // pred_fallthru
          _
      $region12: #{tpu_custom_call.1} parent=5 // pred_fallthru
        _
      %p311 = scmp.lt.s32.totalorder %s28, 2
      // Predicated region
      $region29: #{tpu_custom_call.1} parent=5 // pred_check
        %p312 = pneg %p311
      $region30: #{tpu_custom_call.1} parent=5 // pred_check_branch
        %314 = sbr.rel (%p312) target = $region32
      $region31: #{tpu_custom_call.1} parent=5 // pred_region
        // Predicated region
        $region33: #{tpu_custom_call.1} parent=31 // pred_check
          %p315 = pneg %p62
        $region34: #{tpu_custom_call.1} parent=31 // pred_check_branch
          %317 = sbr.rel (%p315) target = $region36
        $region35: #{tpu_custom_call.1} parent=31 // pred_region
          %s318 = sand.u32 %s52, 1
          %s319 = scalar_lea.sflag [#allocation3], %s318
          %s320 = sand.u32 %s52, 1
          %s321 = smul.addr %s320, 64
          %s322 = scalar_lea.vmem [#allocation2], %s321
          %s323 = smul.u32 8, %s36
          %s325 = ssub.s32 1024, 1024
          %326 = vsyncadd %s319, %s325
          %s327 = smul.addr %s35, 8
          %s328 = sadd.s32 %s323, %s327
          %s329 = smul.addr %s328, 128
          %s330 = scalar_lea.hbm %s0, %s329
          %s331 = sshll.u32 %s322, 4
          %s332 = int_to_ptr.vmem [resolvable:$true] %s331
          %337 = dma.hbm_to_vmem [thread:$0]  %s330, 1024, %s332, %s319, 128, 128, 8
        $region36: #{tpu_custom_call.1} parent=31 // pred_fallthru
          _
        // Predicated region
        $region37: #{tpu_custom_call.1} parent=31 // pred_check
          %p338 = pneg %p90
        $region38: #{tpu_custom_call.1} parent=31 // pred_check_branch
          %340 = sbr.rel (%p338) target = $region40
        $region39: #{tpu_custom_call.1} parent=31 // pred_region
          %s341 = sand.u32 %s28, 1
          %s342 = scalar_lea.sflag [#allocation6], %s341
          %s343 = sand.u32 %s80, 1
          %s344 = smul.addr %s343, 64
          %s345 = scalar_lea.vmem [#allocation5], %s344
          %s346 = smul.u32 8, %s36
          %s348 = ssub.s32 1024, 1024
          %349 = vsyncadd %s342, %s348
          %s350 = smul.addr %s35, 8
          %s351 = sadd.s32 %s346, %s350
          %s352 = smul.addr %s351, 128
          %s353 = scalar_lea.hbm %s1, %s352
          %s354 = sshll.u32 %s345, 4
          %s355 = int_to_ptr.vmem [resolvable:$true] %s354
          %360 = dma.hbm_to_vmem [thread:$0]  %s353, 1024, %s355, %s342, 128, 128, 8
        $region40: #{tpu_custom_call.1} parent=31 // pred_fallthru
          _
        // Predicated region
        $region41: #{tpu_custom_call.1} parent=31 // pred_check
          %p361 = pneg %p118
        $region42: #{tpu_custom_call.1} parent=31 // pred_check_branch
          %363 = sbr.rel (%p361) target = $region44
        $region43: #{tpu_custom_call.1} parent=31 // pred_region
          %s364 = sand.u32 %s28, 1
          %s365 = scalar_lea.sflag [#allocation6], %s364
          %s366 = sand.u32 %s108, 1
          %s367 = smul.addr %s366, 8
          %s368 = scalar_lea.vmem [#allocation7], %s367
          %s370 = ssub.s32 128, 128
          %371 = vsyncadd %s365, %s370
          %s372 = sadd.s32 %s36, %s35
          %s373 = smul.addr %s372, 128
          %s374 = scalar_lea.hbm %s2, %s373
          %s376 = sshll.u32 %s368, 4
          %s377 = int_to_ptr.vmem [resolvable:$true] %s376
          %379 = dma.hbm_to_vmem [thread:$0]  %s374, 128, %s377, %s365
        $region44: #{tpu_custom_call.1} parent=31 // pred_fallthru
          _
      $region32: #{tpu_custom_call.1} parent=5 // pred_fallthru
        _
      %p380 = scmp.le.s32.totalorder 1, %s28
      %p381 = scmp.lt.s32.totalorder %s28, 3
      %p382 = pnand %p380, %p381
      %p383 = pneg %p382
      // Predicated region
      $region45: #{tpu_custom_call.1} parent=5 // pred_check
        _
      $region46: #{tpu_custom_call.1} parent=5 // pred_check_branch
        %385 = sbr.rel (%p382) target = $region48
      $region47: #{tpu_custom_call.1} parent=5 // pred_region
        %s386 = ssub.s32 %s28, 1
        %s387 = sand.u32 %s55, 1
        %s388 = scalar_lea.sflag [#allocation3], %s387
        %s389 = sand.u32 %s55, 1
        %s390 = smul.addr %s389, 64
        %s391 = scalar_lea.vmem [#allocation2], %s390
        // Predicated region
        $region49: #{tpu_custom_call.1} parent=47 // pred_check
          %p392 = pneg %p68
        $region50: #{tpu_custom_call.1} parent=47 // pred_check_branch
          %394 = sbr.rel (%p392) target = $region52
        $region51: #{tpu_custom_call.1} parent=47 // pred_region
          %395 = dma.done %s388, 1024
        $region52: #{tpu_custom_call.1} parent=47 // pred_fallthru
          _
        %s396 = sand.u32 %s33, 1
        %s397 = scalar_lea.sflag [#allocation6], %s396
        %s398 = sand.u32 %s83, 1
        %s399 = smul.addr %s398, 64
        %s400 = scalar_lea.vmem [#allocation5], %s399
        // Predicated region
        $region53: #{tpu_custom_call.1} parent=47 // pred_check
          %p401 = pneg %p96
        $region54: #{tpu_custom_call.1} parent=47 // pred_check_branch
          %403 = sbr.rel (%p401) target = $region56
        $region55: #{tpu_custom_call.1} parent=47 // pred_region
          %404 = dma.done %s397, 1024
        $region56: #{tpu_custom_call.1} parent=47 // pred_fallthru
          _
        %s405 = sand.u32 %s33, 1
        %s406 = scalar_lea.sflag [#allocation6], %s405
        %s407 = sand.u32 %s111, 1
        %s408 = smul.addr %s407, 8
        %s409 = scalar_lea.vmem [#allocation7], %s408
        // Predicated region
        $region57: #{tpu_custom_call.1} parent=47 // pred_check
          %p410 = pneg %p124
        $region58: #{tpu_custom_call.1} parent=47 // pred_check_branch
          %412 = sbr.rel (%p410) target = $region60
        $region59: #{tpu_custom_call.1} parent=47 // pred_region
          %413 = dma.done %s406, 128
        $region60: #{tpu_custom_call.1} parent=47 // pred_fallthru
          _
        // Predicated region
        $region61: #{tpu_custom_call.1} parent=47 // pred_check
          %p414 = pneg %p145
        $region62: #{tpu_custom_call.1} parent=47 // pred_check_branch
          %416 = sbr.rel (%p414) target = $region64
        $region63: #{tpu_custom_call.1} parent=47 // pred_region
          %417 = dma.done [#allocation9], 256
        $region64: #{tpu_custom_call.1} parent=47 // pred_fallthru
          _
        // Predicated region
        $region65: #{tpu_custom_call.1} parent=47 // pred_check
          %p418 = pneg %p166
        $region66: #{tpu_custom_call.1} parent=47 // pred_check_branch
          %420 = sbr.rel (%p418) target = $region68
        $region67: #{tpu_custom_call.1} parent=47 // pred_region
          %421 = dma.done [#allocation9], 256
        $region68: #{tpu_custom_call.1} parent=47 // pred_fallthru
          _
        %s422 = sand.u32 %s55, 1
        %s423 = scalar_lea.sflag [#allocation3], %s422
        %s424 = sand.u32 %s55, 1
        %s425 = smul.addr %s424, 64
        %s426 = scalar_lea.vmem [#allocation2], %s425
        %p427 = pneg %p68
        %p428 = pneg %p65
        %s429 = sand.u32 %s33, 1
        %s430 = scalar_lea.sflag [#allocation6], %s429
        %s431 = sand.u32 %s83, 1
        %s432 = smul.addr %s431, 64
        %s433 = scalar_lea.vmem [#allocation5], %s432
        %p434 = pneg %p96
        %p435 = pneg %p93
        %s436 = sand.u32 %s33, 1
        %s437 = scalar_lea.sflag [#allocation6], %s436
        %s438 = sand.u32 %s111, 1
        %s439 = smul.addr %s438, 8
        %s440 = scalar_lea.vmem [#allocation7], %s439
        %p441 = pneg %p124
        %p442 = pneg %p121
        %p443 = pneg %p145
        %p444 = pneg %p142
        %p445 = pneg %p166
        %p446 = pneg %p163
        %p447 = pneg %p187
        %p448 = pneg %p184
        %p449 = pneg %p208
        %p450 = pneg %p205
        %p451 = pneg %p236
        %p452 = pneg %p233
        %s453 = sand.u32 %s223, 1
        %s454 = scalar_lea.sflag [#allocation4], %s453
        %s455 = sand.u32 %s223, 1
        %s456 = smul.addr %s455, 8
        %s457 = scalar_lea.vmem [#allocation11], %s456
        %p458 = pneg %p264
        %p459 = pneg %p261
        %s460 = sand.u32 %s251, 1
        %s461 = scalar_lea.sflag [#allocation13], %s460
        %s462 = sand.u32 %s251, 1
        %s463 = smul.addr %s462, 8
        %s464 = scalar_lea.vmem [#allocation12], %s463
        %s465 = smul.u32 8, %s38
        %s466 = smul.u32 8, %s38
        %v467 = vld [vmem:[%s391] sm:$0xff]
        %v468 = vld [vmem:[%s391 + $0x8] sm:$0xff]
        %v469 = vld [vmem:[%s391 + $0x10] sm:$0xff]
        %v470 = vld [vmem:[%s391 + $0x18] sm:$0xff]
        %v471 = vld [vmem:[%s391 + $0x20] sm:$0xff]
        %v472 = vld [vmem:[%s391 + $0x28] sm:$0xff]
        %v473 = vld [vmem:[%s391 + $0x30] sm:$0xff]
        %v474 = vld [vmem:[%s391 + $0x38] sm:$0xff]
        %v475 = vld [vmem:[%s400] sm:$0xff]
        %v476 = vld [vmem:[%s400 + $0x8] sm:$0xff]
        %v477 = vld [vmem:[%s400 + $0x10] sm:$0xff]
        %v478 = vld [vmem:[%s400 + $0x18] sm:$0xff]
        %v479 = vld [vmem:[%s400 + $0x20] sm:$0xff]
        %v480 = vld [vmem:[%s400 + $0x28] sm:$0xff]
        %v481 = vld [vmem:[%s400 + $0x30] sm:$0xff]
        %v482 = vld [vmem:[%s400 + $0x38] sm:$0xff]
        %v483 = vld [vmem:[%s409] sm:$0xff]
        %v484 = vld [vmem:[#allocation8] sm:$0xff]
        %v485 = vld [vmem:[#allocation8 + $0x8] sm:$0xff]
        %v486 = vld [vmem:[#allocation10] sm:$0xff]
        %v487 = vld [vmem:[#allocation10 + $0x8] sm:$0xff]
        %vm488 = vcmask 130048
        %v490 = vsel %vm488, %v475, 0
        %v493 = vsel %vm488, %v476, 0
        %v496 = vsel %vm488, %v477, 0
        %v499 = vsel %vm488, %v478, 0
        %v502 = vsel %vm488, %v479, 0
        %v505 = vsel %vm488, %v480, 0
        %v508 = vsel %vm488, %v481, 0
        %v511 = vsel %vm488, %v482, 0
        %513 = vmatprep.subr.mxu0 0.0
        %514 = vmatpush1.msra.mxu0 %v486
        %515 = vmatprep.subr.mxu0 0.0
        %516 = vmatpush1.msra.mxu0 %v487
        %517 = vmatprep.subr.mxu0 0.0
        %518 = vmatpush1.msra.mxu0 0.0
        %519 = vmatprep.subr.mxu0 0.0
        %520 = vmatpush1.msra.mxu0 0.0
        %521 = vmatprep.subr.mxu0 0.0
        %522 = vmatpush1.msra.mxu0 0.0
        %523 = vmatprep.subr.mxu0 0.0
        %524 = vmatpush1.msra.mxu0 0.0
        %525 = vmatprep.subr.mxu0 0.0
        %526 = vmatpush1.msra.mxu0 0.0
        %527 = vmatprep.subr.mxu0 0.0
        %528 = vmatpush1.msra.mxu0 0.0
        %529 = vmatprep.subr.mxu0 0.0
        %530 = vmatpush1.msra.mxu0 0.0
        %531 = vmatprep.subr.mxu0 0.0
        %532 = vmatpush1.msra.mxu0 0.0
        %533 = vmatprep.subr.mxu0 0.0
        %534 = vmatpush1.msra.mxu0 0.0
        %535 = vmatprep.subr.mxu0 0.0
        %536 = vmatpush1.msra.mxu0 0.0
        %537 = vmatprep.subr.mxu0 0.0
        %538 = vmatpush1.msra.mxu0 0.0
        %539 = vmatprep.subr.mxu0 0.0
        %540 = vmatpush1.msra.mxu0 0.0
        %541 = vmatprep.subr.mxu0 0.0
        %542 = vmatpush1.msra.mxu0 0.0
        %543 = vmatprep.subr.mxu0 0.0
        %544 = vmatpush1.msra.mxu0 0.0
        %545 = vmatprep.subr.mxu0 0.0
        %546 = vmatpush1.msra.mxu0 0.0
        %547 = vmatprep.subr.mxu0 0.0
        %548 = vmatpush1.msra.mxu0 0.0
        %549 = vmatprep.subr.mxu0 0.0
        %550 = vmatpush1.msra.mxu0 0.0
        %551 = vmatprep.subr.mxu0 0.0
        %552 = vmatpush1.msra.mxu0 0.0
        %553 = vmatprep.subr.mxu0 0.0
        %554 = vmatpush1.msra.mxu0 0.0
        %555 = vmatprep.subr.mxu0 0.0
        %556 = vmatpush1.msra.mxu0 0.0
        %557 = vmatprep.subr.mxu0 0.0
        %558 = vmatpush1.msra.mxu0 0.0
        %559 = vmatprep.subr.mxu0 0.0
        %560 = vmatpush1.msra.mxu0 0.0
        %561 = vmatprep.subr.mxu0 0.0
        %562 = vmatpush1.msra.mxu0 0.0
        %563 = vmatprep.subr.mxu0 0.0
        %564 = vmatpush1.msra.mxu0 0.0
        %565 = vmatprep.subr.mxu0 0.0
        %566 = vmatpush1.msra.mxu0 0.0
        %567 = vmatprep.subr.mxu0 0.0
        %568 = vmatpush1.msra.mxu0 0.0
        %569 = vmatprep.subr.mxu0 0.0
        %570 = vmatpush1.msra.mxu0 0.0
        %571 = vmatprep.subr.mxu0 0.0
        %572 = vmatpush1.msra.mxu0 0.0
        %573 = vmatprep.subr.mxu0 0.0
        %574 = vmatpush1.msra.mxu0 0.0
        %575 = vmatprep.subr.mxu0 0.0
        %576 = vmatpush1.msra.mxu0 0.0
        %577 = vmatprep.mubr.f32.mxu0 0.0
        %578 = vmatmul.mubr.f32.gmra.mrb[0].mxu0 %v490
        %v579 = vpop.f32.mrb[0].mxu0
        %v580 = vadd.f32 0.0, %v579
        %v581 = vpop.f32.mrb[0].mxu0
        %582 = vmatprep.mubr.f32.mxu0 0.0
        %583 = vmatmul.mubr.f32.gmra.mrb[0].mxu0 %v493
        %v584 = vpop.f32.mrb[0].mxu0
        %v585 = vadd.f32 0.0, %v584
        %v586 = vpop.f32.mrb[0].mxu0
        %587 = vmatprep.mubr.f32.mxu0 0.0
        %588 = vmatmul.mubr.f32.gmra.mrb[0].mxu0 %v496
        %v589 = vpop.f32.mrb[0].mxu0
        %v590 = vadd.f32 0.0, %v589
        %v591 = vpop.f32.mrb[0].mxu0
        %592 = vmatprep.mubr.f32.mxu0 0.0
        %593 = vmatmul.mubr.f32.gmra.mrb[0].mxu0 %v499
        %v594 = vpop.f32.mrb[0].mxu0
        %v595 = vadd.f32 0.0, %v594
        %v596 = vpop.f32.mrb[0].mxu0
        %597 = vmatprep.mubr.f32.mxu0 0.0
        %598 = vmatmul.mubr.f32.gmra.mrb[0].mxu0 %v502
        %v599 = vpop.f32.mrb[0].mxu0
        %v600 = vadd.f32 0.0, %v599
        %v601 = vpop.f32.mrb[0].mxu0
        %602 = vmatprep.mubr.f32.mxu0 0.0
        %603 = vmatmul.mubr.f32.gmra.mrb[0].mxu0 %v505
        %v604 = vpop.f32.mrb[0].mxu0
        %v605 = vadd.f32 0.0, %v604
        %v606 = vpop.f32.mrb[0].mxu0
        %607 = vmatprep.mubr.f32.mxu0 0.0
        %608 = vmatmul.mubr.f32.gmra.mrb[0].mxu0 %v508
        %v609 = vpop.f32.mrb[0].mxu0
        %v610 = vadd.f32 0.0, %v609
        %v611 = vpop.f32.mrb[0].mxu0
        %612 = vmatprep.mubr.f32.mxu0 0.0
        %613 = vmatmul.mubr.f32.gmra.mrb[0].mxu0 %v511
        %v614 = vpop.f32.mrb[0].mxu0
        %v615 = vadd.f32 0.0, %v614
        %v616 = vpop.f32.mrb[0].mxu0
        %617 = vdwg.mxu0
        %v619 = vsel %vm488, %v467, 0
        %v622 = vsel %vm488, %v468, 0
        %v625 = vsel %vm488, %v469, 0
        %v628 = vsel %vm488, %v470, 0
        %v631 = vsel %vm488, %v471, 0
        %v634 = vsel %vm488, %v472, 0
        %v637 = vsel %vm488, %v473, 0
        %v640 = vsel %vm488, %v474, 0
        %642 = vmatprep.subr.mxu0 0.0
        %643 = vmatpush1.msra.mxu0 %v484
        %644 = vmatprep.subr.mxu0 0.0
        %645 = vmatpush1.msra.mxu0 %v485
        %646 = vmatprep.subr.mxu0 0.0
        %647 = vmatpush1.msra.mxu0 0.0
        %648 = vmatprep.subr.mxu0 0.0
        %649 = vmatpush1.msra.mxu0 0.0
        %650 = vmatprep.subr.mxu0 0.0
        %651 = vmatpush1.msra.mxu0 0.0
        %652 = vmatprep.subr.mxu0 0.0
        %653 = vmatpush1.msra.mxu0 0.0
        %654 = vmatprep.subr.mxu0 0.0
        %655 = vmatpush1.msra.mxu0 0.0
        %656 = vmatprep.subr.mxu0 0.0
        %657 = vmatpush1.msra.mxu0 0.0
        %658 = vmatprep.subr.mxu0 0.0
        %659 = vmatpush1.msra.mxu0 0.0
        %660 = vmatprep.subr.mxu0 0.0
        %661 = vmatpush1.msra.mxu0 0.0
        %662 = vmatprep.subr.mxu0 0.0
        %663 = vmatpush1.msra.mxu0 0.0
        %664 = vmatprep.subr.mxu0 0.0
        %665 = vmatpush1.msra.mxu0 0.0
        %666 = vmatprep.subr.mxu0 0.0
        %667 = vmatpush1.msra.mxu0 0.0
        %668 = vmatprep.subr.mxu0 0.0
        %669 = vmatpush1.msra.mxu0 0.0
        %670 = vmatprep.subr.mxu0 0.0
        %671 = vmatpush1.msra.mxu0 0.0
        %672 = vmatprep.subr.mxu0 0.0
        %673 = vmatpush1.msra.mxu0 0.0
        %674 = vmatprep.subr.mxu0 0.0
        %675 = vmatpush1.msra.mxu0 0.0
        %676 = vmatprep.subr.mxu0 0.0
        %677 = vmatpush1.msra.mxu0 0.0
        %678 = vmatprep.subr.mxu0 0.0
        %679 = vmatpush1.msra.mxu0 0.0
        %680 = vmatprep.subr.mxu0 0.0
        %681 = vmatpush1.msra.mxu0 0.0
        %682 = vmatprep.subr.mxu0 0.0
        %683 = vmatpush1.msra.mxu0 0.0
        %684 = vmatprep.subr.mxu0 0.0
        %685 = vmatpush1.msra.mxu0 0.0
        %686 = vmatprep.subr.mxu0 0.0
        %687 = vmatpush1.msra.mxu0 0.0
        %688 = vmatprep.subr.mxu0 0.0
        %689 = vmatpush1.msra.mxu0 0.0
        %690 = vmatprep.subr.mxu0 0.0
        %691 = vmatpush1.msra.mxu0 0.0
        %692 = vmatprep.subr.mxu0 0.0
        %693 = vmatpush1.msra.mxu0 0.0
        %694 = vmatprep.subr.mxu0 0.0
        %695 = vmatpush1.msra.mxu0 0.0
        %696 = vmatprep.subr.mxu0 0.0
        %697 = vmatpush1.msra.mxu0 0.0
        %698 = vmatprep.subr.mxu0 0.0
        %699 = vmatpush1.msra.mxu0 0.0
        %700 = vmatprep.subr.mxu0 0.0
        %701 = vmatpush1.msra.mxu0 0.0
        %702 = vmatprep.subr.mxu0 0.0
        %703 = vmatpush1.msra.mxu0 0.0
        %704 = vmatprep.subr.mxu0 0.0
        %705 = vmatpush1.msra.mxu0 0.0
        %706 = vmatprep.mubr.f32.mxu0 0.0
        %707 = vmatmul.mubr.f32.gmra.mrb[0].mxu0 %v619
        %v708 = vpop.f32.mrb[0].mxu0
        %v709 = vadd.f32 %v580, %v708
        %v710 = vpop.f32.mrb[0].mxu0
        %711 = vmatprep.mubr.f32.mxu0 0.0
        %712 = vmatmul.mubr.f32.gmra.mrb[0].mxu0 %v622
        %v713 = vpop.f32.mrb[0].mxu0
        %v714 = vadd.f32 %v585, %v713
        %v715 = vpop.f32.mrb[0].mxu0
        %716 = vmatprep.mubr.f32.mxu0 0.0
        %717 = vmatmul.mubr.f32.gmra.mrb[0].mxu0 %v625
        %v718 = vpop.f32.mrb[0].mxu0
        %v719 = vadd.f32 %v590, %v718
        %v720 = vpop.f32.mrb[0].mxu0
        %721 = vmatprep.mubr.f32.mxu0 0.0
        %722 = vmatmul.mubr.f32.gmra.mrb[0].mxu0 %v628
        %v723 = vpop.f32.mrb[0].mxu0
        %v724 = vadd.f32 %v595, %v723
        %v725 = vpop.f32.mrb[0].mxu0
        %726 = vmatprep.mubr.f32.mxu0 0.0
        %727 = vmatmul.mubr.f32.gmra.mrb[0].mxu0 %v631
        %v728 = vpop.f32.mrb[0].mxu0
        %v729 = vadd.f32 %v600, %v728
        %v730 = vpop.f32.mrb[0].mxu0
        %731 = vmatprep.mubr.f32.mxu0 0.0
        %732 = vmatmul.mubr.f32.gmra.mrb[0].mxu0 %v634
        %v733 = vpop.f32.mrb[0].mxu0
        %v734 = vadd.f32 %v605, %v733
        %v735 = vpop.f32.mrb[0].mxu0
        %736 = vmatprep.mubr.f32.mxu0 0.0
        %737 = vmatmul.mubr.f32.gmra.mrb[0].mxu0 %v637
        %v738 = vpop.f32.mrb[0].mxu0
        %v739 = vadd.f32 %v610, %v738
        %v740 = vpop.f32.mrb[0].mxu0
        %741 = vmatprep.mubr.f32.mxu0 0.0
        %742 = vmatmul.mubr.f32.gmra.mrb[0].mxu0 %v640
        %v743 = vpop.f32.mrb[0].mxu0
        %v744 = vadd.f32 %v615, %v743
        %v745 = vpop.f32.mrb[0].mxu0
        %746 = vdwg.mxu0
        %v747 = vld [vmem:[%s5] sm:$0x1]
        %v749 = vlaneseq
        %v750 = vshrl.u32 %v749, 7
        %v751 = vsub.s32 0, %v750
        %v752 = vrot.slane %v747, %v751
        %v754 = vadd.f32 %v709, %v752
        %v755 = vadd.f32 %v714, %v752
        %v756 = vadd.f32 %v719, %v752
        %v757 = vadd.f32 %v724, %v752
        %v758 = vadd.f32 %v729, %v752
        %v759 = vadd.f32 %v734, %v752
        %v760 = vadd.f32 %v739, %v752
        %v761 = vadd.f32 %v744, %v752
        %v762 = vtanh.pop %v754
        %v763 = vtanh.pop %v755
        %v764 = vtanh.pop %v756
        %v765 = vtanh.pop %v757
        %v766 = vtanh.pop %v758
        %v767 = vtanh.pop %v759
        %v768 = vtanh.pop %v760
        %v769 = vtanh.pop %v761
        %v770 = vld [vmem:[%s6] sm:$0x1]
        %v772 = vlaneseq
        %v773 = vshrl.u32 %v772, 7
        %v774 = vsub.s32 0, %v773
        %v775 = vrot.slane %v770, %v774
        %v777 = vmul.f32 %v762, %v775
        %v778 = vmul.f32 %v763, %v775
        %v779 = vmul.f32 %v764, %v775
        %v780 = vmul.f32 %v765, %v775
        %v781 = vmul.f32 %v766, %v775
        %v782 = vmul.f32 %v767, %v775
        %v783 = vmul.f32 %v768, %v775
        %v784 = vmul.f32 %v769, %v775
        %785 = vadd.xlane.f32.xlu0 %v777
        %v786 = vpop.xlane.xlu0 %785
        %787 = vadd.xlane.f32.xlu0 %v778
        %v788 = vpop.xlane.xlu0 %787
        %789 = vadd.xlane.f32.xlu0 %v779
        %v790 = vpop.xlane.xlu0 %789
        %791 = vadd.xlane.f32.xlu0 %v780
        %v792 = vpop.xlane.xlu0 %791
        %793 = vadd.xlane.f32.xlu0 %v781
        %v794 = vpop.xlane.xlu0 %793
        %795 = vadd.xlane.f32.xlu0 %v782
        %v796 = vpop.xlane.xlu0 %795
        %797 = vadd.xlane.f32.xlu0 %v783
        %v798 = vpop.xlane.xlu0 %797
        %799 = vadd.xlane.f32.xlu0 %v784
        %v800 = vpop.xlane.xlu0 %799
        %v809 = vlaneseq
        %v810 = vand.u32 %v809, 127
        %v811 = vlaneseq
        %v812 = vshrl.u32 %v811, 7
        %v813 = vsub.s32 %v810, %v812
        %v814 = vrot.slane %v786, %v813
        %v815 = vlaneseq
        %v816 = vshrl.u32 %v815, 7
        %v817 = vsub.s32 %v810, %v816
        %v818 = vrot.slane %v788, %v817
        %v819 = vlaneseq
        %v820 = vshrl.u32 %v819, 7
        %v821 = vsub.s32 %v810, %v820
        %v822 = vrot.slane %v790, %v821
        %v823 = vlaneseq
        %v824 = vshrl.u32 %v823, 7
        %v825 = vsub.s32 %v810, %v824
        %v826 = vrot.slane %v792, %v825
        %v827 = vlaneseq
        %v828 = vshrl.u32 %v827, 7
        %v829 = vsub.s32 %v810, %v828
        %v830 = vrot.slane %v794, %v829
        %v831 = vlaneseq
        %v832 = vshrl.u32 %v831, 7
        %v833 = vsub.s32 %v810, %v832
        %v834 = vrot.slane %v796, %v833
        %v835 = vlaneseq
        %v836 = vshrl.u32 %v835, 7
        %v837 = vsub.s32 %v810, %v836
        %v838 = vrot.slane %v798, %v837
        %v839 = vlaneseq
        %v840 = vshrl.u32 %v839, 7
        %v841 = vsub.s32 %v810, %v840
        %v842 = vrot.slane %v800, %v841
        %vm843 = vcmask 1041409
        %v844 = vsel %vm843, %v818, %v814
        %vm845 = vcmask 1042434
        %v846 = vsel %vm845, %v822, %v844
        %vm847 = vcmask 1043459
        %v848 = vsel %vm847, %v826, %v846
        %vm849 = vcmask 1044484
        %v850 = vsel %vm849, %v830, %v848
        %vm851 = vcmask 1045509
        %v852 = vsel %vm851, %v834, %v850
        %vm853 = vcmask 1046534
        %v854 = vsel %vm853, %v838, %v852
        %vm855 = vcmask 1047559
        %v856 = vsel %vm855, %v842, %v854
        %v858 = vmul.f32 %v483, %v856
        %vm859 = vcmask 64512
        %v860 = vsel %vm859, %v858, -inf
        %861 = vmax.xlane.f32.xlu0 %v860
        %v862 = vpop.xlane.xlu0 %861
        %v863 = vsub.f32 %v858, %v862
        %v864 = vmul.f32 %v863, 1.442695
        %v865 = vpow.pop %v864
        %v866 = vsel %vm859, %v865, 0.0
        %867 = vadd.xlane.f32.xlu0 %v866
        %v868 = vpop.xlane.xlu0 %867
        %v869 = vrcp.pop %v868
        %v870 = vmul.f32 %v865, %v869
        %v871 = vlaneseq
        %v872 = vshrl.u32 %v871, 7
        %v873 = vsub.s32 0, %v872
        %v874 = vrot.slane %v870, %v873
        %876 = vbcast.lane.b32.xlu0 %v874, 256
        %v877 = vpop.permute.xlu0 %876
        %v878 = vlaneseq
        %v879 = vshrl.u32 %v878, 7
        %v880 = vsub.s32 1, %v879
        %v881 = vrot.slane %v870, %v880
        %883 = vbcast.lane.b32.xlu0 %v881, 256
        %v884 = vpop.permute.xlu0 %883
        %v885 = vlaneseq
        %v886 = vshrl.u32 %v885, 7
        %v887 = vsub.s32 2, %v886
        %v888 = vrot.slane %v870, %v887
        %890 = vbcast.lane.b32.xlu0 %v888, 256
        %v891 = vpop.permute.xlu0 %890
        %v892 = vlaneseq
        %v893 = vshrl.u32 %v892, 7
        %v894 = vsub.s32 3, %v893
        %v895 = vrot.slane %v870, %v894
        %897 = vbcast.lane.b32.xlu0 %v895, 256
        %v898 = vpop.permute.xlu0 %897
        %v899 = vlaneseq
        %v900 = vshrl.u32 %v899, 7
        %v901 = vsub.s32 4, %v900
        %v902 = vrot.slane %v870, %v901
        %904 = vbcast.lane.b32.xlu0 %v902, 256
        %v905 = vpop.permute.xlu0 %904
        %v906 = vlaneseq
        %v907 = vshrl.u32 %v906, 7
        %v908 = vsub.s32 5, %v907
        %v909 = vrot.slane %v870, %v908
        %911 = vbcast.lane.b32.xlu0 %v909, 256
        %v912 = vpop.permute.xlu0 %911
        %v913 = vlaneseq
        %v914 = vshrl.u32 %v913, 7
        %v915 = vsub.s32 6, %v914
        %v916 = vrot.slane %v870, %v915
        %918 = vbcast.lane.b32.xlu0 %v916, 256
        %v919 = vpop.permute.xlu0 %918
        %v920 = vlaneseq
        %v921 = vshrl.u32 %v920, 7
        %v922 = vsub.s32 7, %v921
        %v923 = vrot.slane %v870, %v922
        %925 = vbcast.lane.b32.xlu0 %v923, 256
        %v926 = vpop.permute.xlu0 %925
        %v927 = vmul.f32 %v877, %v467
        %v928 = vmul.f32 %v884, %v468
        %v929 = vmul.f32 %v891, %v469
        %v930 = vmul.f32 %v898, %v470
        %v931 = vmul.f32 %v905, %v471
        %v932 = vmul.f32 %v912, %v472
        %v933 = vmul.f32 %v919, %v473
        %v934 = vmul.f32 %v926, %v474
        %v935 = vsel %vm488, %v927, 0.0
        %v936 = vrot.slane %v935, 4
        %v937 = vadd.f32 %v935, %v936
        %v938 = vrot.slane %v937, 2
        %v939 = vadd.f32 %v937, %v938
        %v940 = vrot.slane %v939, 1
        %v941 = vadd.f32 %v939, %v940
        %v942 = vsel %vm488, %v928, 0.0
        %v943 = vrot.slane %v942, 4
        %v944 = vadd.f32 %v942, %v943
        %v945 = vrot.slane %v944, 2
        %v946 = vadd.f32 %v944, %v945
        %v947 = vrot.slane %v946, 1
        %v948 = vadd.f32 %v946, %v947
        %v949 = vsel %vm488, %v929, 0.0
        %v950 = vrot.slane %v949, 4
        %v951 = vadd.f32 %v949, %v950
        %v952 = vrot.slane %v951, 2
        %v953 = vadd.f32 %v951, %v952
        %v954 = vrot.slane %v953, 1
        %v955 = vadd.f32 %v953, %v954
        %v956 = vsel %vm488, %v930, 0.0
        %v957 = vrot.slane %v956, 4
        %v958 = vadd.f32 %v956, %v957
        %v959 = vrot.slane %v958, 2
        %v960 = vadd.f32 %v958, %v959
        %v961 = vrot.slane %v960, 1
        %v962 = vadd.f32 %v960, %v961
        %v963 = vsel %vm488, %v931, 0.0
        %v964 = vrot.slane %v963, 4
        %v965 = vadd.f32 %v963, %v964
        %v966 = vrot.slane %v965, 2
        %v967 = vadd.f32 %v965, %v966
        %v968 = vrot.slane %v967, 1
        %v969 = vadd.f32 %v967, %v968
        %v970 = vsel %vm488, %v932, 0.0
        %v971 = vrot.slane %v970, 4
        %v972 = vadd.f32 %v970, %v971
        %v973 = vrot.slane %v972, 2
        %v974 = vadd.f32 %v972, %v973
        %v975 = vrot.slane %v974, 1
        %v976 = vadd.f32 %v974, %v975
        %v977 = vsel %vm488, %v933, 0.0
        %v978 = vrot.slane %v977, 4
        %v979 = vadd.f32 %v977, %v978
        %v980 = vrot.slane %v979, 2
        %v981 = vadd.f32 %v979, %v980
        %v982 = vrot.slane %v981, 1
        %v983 = vadd.f32 %v981, %v982
        %v984 = vsel %vm488, %v934, 0.0
        %v985 = vrot.slane %v984, 4
        %v986 = vadd.f32 %v984, %v985
        %v987 = vrot.slane %v986, 2
        %v988 = vadd.f32 %v986, %v987
        %v989 = vrot.slane %v988, 1
        %v990 = vadd.f32 %v988, %v989
        %v999 = vsel %vm843, %v948, %v941
        %v1000 = vsel %vm845, %v955, %v999
        %v1001 = vsel %vm847, %v962, %v1000
        %v1002 = vsel %vm849, %v969, %v1001
        %v1003 = vsel %vm851, %v976, %v1002
        %v1004 = vsel %vm853, %v983, %v1003
        %v1005 = vsel %vm855, %v990, %v1004
        %v1007 = vsel %vm488, %v1005, 0.0
        %1008 = vst [vmem:[%s457] sm:$0xff] %v1007
        %v1009 = vsel %vm859, %v870, 0.0
        %1010 = vst [vmem:[%s464] sm:$0xff] %v1009
        %s1011 = sand.u32 %s223, 1
        %s1012 = scalar_lea.sflag [#allocation4], %s1011
        %s1013 = sand.u32 %s223, 1
        %s1014 = smul.addr %s1013, 8
        %s1015 = scalar_lea.vmem [#allocation11], %s1014
        %s1016 = sand.u32 %s251, 1
        %s1017 = scalar_lea.sflag [#allocation13], %s1016
        %s1018 = sand.u32 %s251, 1
        %s1019 = smul.addr %s1018, 8
        %s1020 = scalar_lea.vmem [#allocation12], %s1019
        // Predicated region
        $region69: #{tpu_custom_call.1} parent=47 // pred_check
          %p1021 = pneg %p233
        $region70: #{tpu_custom_call.1} parent=47 // pred_check_branch
          %1023 = sbr.rel (%p1021) target = $region72
        $region71: #{tpu_custom_call.1} parent=47 // pred_region
          %s1025 = ssub.s32 128, 128
          %1026 = vsyncadd %s1012, %s1025
          %s1027 = sadd.s32 %s38, %s37
          %s1028 = smul.addr %s1027, 128
          %s1029 = scalar_lea.hbm %s7, %s1028
          %s1031 = sshll.u32 %s1015, 4
          %s1032 = int_to_ptr.vmem [resolvable:$true] %s1031
          %1034 = dma.vmem_to_hbm [thread:$0]  %s1032, 128, %s1029, %s1012
        $region72: #{tpu_custom_call.1} parent=47 // pred_fallthru
          _
        // Predicated region
        $region73: #{tpu_custom_call.1} parent=47 // pred_check
          %p1035 = pneg %p261
        $region74: #{tpu_custom_call.1} parent=47 // pred_check_branch
          %1037 = sbr.rel (%p1035) target = $region76
        $region75: #{tpu_custom_call.1} parent=47 // pred_region
          %s1039 = ssub.s32 128, 128
          %1040 = vsyncadd %s1017, %s1039
          %s1041 = sadd.s32 %s38, %s37
          %s1042 = smul.addr %s1041, 128
          %s1043 = scalar_lea.hbm %s8, %s1042
          %s1045 = sshll.u32 %s1020, 4
          %s1046 = int_to_ptr.vmem [resolvable:$true] %s1045
          %1048 = dma.vmem_to_hbm [thread:$0]  %s1046, 128, %s1043, %s1017
        $region76: #{tpu_custom_call.1} parent=47 // pred_fallthru
          _
      $region48: #{tpu_custom_call.1} parent=5 // pred_fallthru
        _
      %p1049 = scmp.le.s32.totalorder 2, %s28
      // Predicated region
      $region77: #{tpu_custom_call.1} parent=5 // pred_check
        %p1050 = pneg %p1049
      $region78: #{tpu_custom_call.1} parent=5 // pred_check_branch
        %1052 = sbr.rel (%p1050) target = $region80
      $region79: #{tpu_custom_call.1} parent=5 // pred_region
        %s1053 = ssub.s32 %s28, 2
        // Predicated region
        $region81: #{tpu_custom_call.1} parent=79 // pred_check
          %p1054 = pneg %p239
        $region82: #{tpu_custom_call.1} parent=79 // pred_check_branch
          %1056 = sbr.rel (%p1054) target = $region84
        $region83: #{tpu_custom_call.1} parent=79 // pred_region
          %s1057 = sand.u32 %s224, 1
          %s1058 = scalar_lea.sflag [#allocation4], %s1057
          %s1059 = sand.u32 %s224, 1
          %s1060 = smul.addr %s1059, 8
          %s1061 = scalar_lea.vmem [#allocation11], %s1060
          %1062 = dma.done %s1058, 128
        $region84: #{tpu_custom_call.1} parent=79 // pred_fallthru
          _
        // Predicated region
        $region85: #{tpu_custom_call.1} parent=79 // pred_check
          %p1063 = pneg %p267
        $region86: #{tpu_custom_call.1} parent=79 // pred_check_branch
          %1065 = sbr.rel (%p1063) target = $region88
        $region87: #{tpu_custom_call.1} parent=79 // pred_region
          %s1066 = sand.u32 %s252, 1
          %s1067 = scalar_lea.sflag [#allocation13], %s1066
          %s1068 = sand.u32 %s252, 1
          %s1069 = smul.addr %s1068, 8
          %s1070 = scalar_lea.vmem [#allocation12], %s1069
          %1071 = dma.done %s1067, 128
        $region88: #{tpu_custom_call.1} parent=79 // pred_fallthru
          _
      $region80: #{tpu_custom_call.1} parent=5 // pred_fallthru
        _
    $region6: #{tpu_custom_call.1} parent=1 // loop_footer
      %s32 = sadd.s32 1, %s28
    $region7: #{tpu_custom_call.1} parent=1 // loop_footer_branch
      %27 = sbr.rel target = $region3
    $region8: #{tpu_custom_call.1} parent=1 // loop_exit
      _
    %1072 = vsyncpa [#allocation3], 1
    %s1073 = scalar_lea.sflag [#allocation3], 1
    %1074 = vsyncpa %s1073, 1
    %1075 = vsyncpa [#allocation6], 1
    %s1076 = scalar_lea.sflag [#allocation6], 1
    %1077 = vsyncpa %s1076, 1
    %1078 = vsyncpa [#allocation9], 1
    %1079 = vsyncpa [#allocation4], 1
    %s1080 = scalar_lea.sflag [#allocation4], 1
    %1081 = vsyncpa %s1080, 1
    %1082 = vsyncpa [#allocation13], 1
    %s1083 = scalar_lea.sflag [#allocation13], 1
    %1084 = vsyncpa %s1083, 1

</llo_original>
